<compile_context>
chip_gen: v7x
topology: tpu7x:2x2x1
jax: 0.10.0
libtpu: 0.0.40
codegen_flags: <defaults>
</compile_context>

<pallas_src>
import functools
import math

import jax
import jax.numpy as jnp
from jax import lax
from jax.experimental import pallas as pl
from jax.experimental.pallas import tpu as pltpu

K = 3          # kernel_size
PAD = 1
STRIDE = 1
DIL = 1
DG = 1         # deformable_groups
KK = K * K
_VMEM_LIMIT = 64 * 1024 * 1024   # re-derive per chip (<= ~48 MiB on v7x at prod tiles)


# ==========================================================================
# Kernel 1/2: pointwise (1x1) conv + folded BN + ReLU (+ residual), row-tiled
# ==========================================================================
def _mm_bias_act_kernel(x_ref, w_ref, b_ref, out_ref, *, mxu_dtype):
    acc = jnp.dot(x_ref[...].astype(mxu_dtype), w_ref[...],
                  preferred_element_type=jnp.float32)
    out_ref[...] = jnp.maximum(acc + b_ref[...], 0.0)


def _mm_bias_res_act_kernel(x_ref, res_ref, w_ref, b_ref, out_ref, *, mxu_dtype):
    acc = jnp.dot(x_ref[...].astype(mxu_dtype), w_ref[...],
                  preferred_element_type=jnp.float32)
    out_ref[...] = jnp.maximum(acc + b_ref[...] + res_ref[...], 0.0)


def _pointwise_conv(x2d, w_io, bias, residual=None, *, mxu_dtype, tile_rows=256):
    rows, cin = x2d.shape
    cout = w_io.shape[-1]
    tr = tile_rows if rows % tile_rows == 0 else rows
    grid = (rows // tr,)
    w_c = w_io.astype(mxu_dtype)
    b2 = bias.reshape(1, cout).astype(jnp.float32)
    cp = pltpu.CompilerParams(dimension_semantics=("parallel",),
                              vmem_limit_bytes=_VMEM_LIMIT)
    if residual is None:
        kern = functools.partial(_mm_bias_act_kernel, mxu_dtype=mxu_dtype)
        return pl.pallas_call(
            kern,
            out_shape=jax.ShapeDtypeStruct((rows, cout), jnp.float32),
            grid=grid,
            in_specs=[pl.BlockSpec((tr, cin), lambda i: (i, 0)),
                      pl.BlockSpec((cin, cout), lambda i: (0, 0)),
                      pl.BlockSpec((1, cout), lambda i: (0, 0))],
            out_specs=pl.BlockSpec((tr, cout), lambda i: (i, 0)),
            compiler_params=cp,
        )(x2d, w_c, b2)
    kern = functools.partial(_mm_bias_res_act_kernel, mxu_dtype=mxu_dtype)
    return pl.pallas_call(
        kern,
        out_shape=jax.ShapeDtypeStruct((rows, cout), jnp.float32),
        grid=grid,
        in_specs=[pl.BlockSpec((tr, cin), lambda i: (i, 0)),
                  pl.BlockSpec((tr, cout), lambda i: (i, 0)),
                  pl.BlockSpec((cin, cout), lambda i: (0, 0)),
                  pl.BlockSpec((1, cout), lambda i: (0, 0))],
        out_specs=pl.BlockSpec((tr, cout), lambda i: (i, 0)),
        compiler_params=cp,
    )(x2d, residual, w_c, b2)


# ==========================================================================
# Kernel 3: fused conv_offset_mask (3x3) + DCNv2 + folded bn2 + ReLU
#   x layout: (N, H, W*C)  -- lane index l = col*C + channel
#   grid: (batch, query-row-tile); TQ query pixels produced per invocation
# ==========================================================================
def _dcn_kernel(x_ref, w_off_ref, b_off_ref, w_dcn_ref, b_dcn_ref, out_ref,
                *, height, width, chans, tq, mxu_dtype):
    coff = w_off_ref.shape[-1]
    cout = w_dcn_ref.shape[-1]
    x_rows = x_ref[0]                                           # (H, W*C), f32

    # ---- loop-invariant index helpers (hoisted: JAX does not CSE iotas) ----
    q0 = pl.program_id(1) * tq
    q_ids = q0 + lax.broadcasted_iota(jnp.int32, (tq, 1), 0)     # flat pixel id
    ho = (q_ids // width).astype(jnp.float32)                    # output row
    wo = (q_ids % width).astype(jnp.float32)                     # output col
    h_ids = lax.broadcasted_iota(jnp.int32, (tq, height), 1)
    lane_col = lax.broadcasted_iota(jnp.int32, (tq, width * chans), 1) // chans
    # S: (W*C, C) 0/1 matrix that sums lanes of equal channel (grouped lane reduce
    # on the MXU).  TODO(synk): replace with a real dynamic gather when available.
    s_mat = (lax.broadcasted_iota(jnp.int32, (width * chans, chans), 0) % chans ==
             lax.broadcasted_iota(jnp.int32, (width * chans, chans), 1)
             ).astype(jnp.float32)

    def bilinear_sample(h_im, w_im):
        # DCNv2 bilinear sample with zero padding, factorized as:
        #   row one-hot + vertical interp (MXU)  ->  column interp per lane (VPU)
        #   ->  grouped per-channel lane reduce (MXU, via s_mat).
        # Index / coefficient math stays in f32 & int32 (never bf16).
        valid = ((h_im > -1.0) & (w_im > -1.0) &
                 (h_im < height) & (w_im < width))               # (TQ, 1)
        h0 = jnp.floor(h_im)
        w0 = jnp.floor(w_im)
        lh = h_im - h0
        lw = w_im - w0
        h0i = h0.astype(jnp.int32)
        w0i = w0.astype(jnp.int32)
        rmat = (jnp.where(valid & (h0i >= 0) & (h_ids == h0i), 1.0 - lh, 0.0) +
                jnp.where(valid & (h0i + 1 <= height - 1) & (h_ids == h0i + 1),
                          lh, 0.0))                               # (TQ, H)
        vrow = jnp.dot(rmat, x_rows, preferred_element_type=jnp.float32)  # (TQ, W*C)
        cmat = (jnp.where((w0i >= 0) & (lane_col == w0i), 1.0 - lw, 0.0) +
                jnp.where((w0i + 1 <= width - 1) & (lane_col == w0i + 1),
                          lw, 0.0))                               # (TQ, W*C)
        return jnp.dot(vrow * cmat, s_mat,
                       preferred_element_type=jnp.float32)        # (TQ, C)

    # ---- fused conv_offset_mask: 3x3 conv, stride 1, zero padding ----
    off_acc = jnp.zeros((tq, coff), jnp.float32)
    for kk in range(KK):                     # static unroll over the 9 taps
        ki, kj = kk // K, kk % K
        patch = bilinear_sample(ho * STRIDE - PAD + ki * DIL,
                                wo * STRIDE - PAD + kj * DIL)
        off_acc = off_acc + jnp.dot(patch.astype(mxu_dtype), w_off_ref[kk],
                                    preferred_element_type=jnp.float32)
    off_acc = off_acc + b_off_ref[...]

    # channel 2*kk -> dy, 2*kk+1 -> dx, 2*KK+kk -> mask logit
    # (torch.cat(o1, o2) over adjacent chunks is the identity; never materialized)
    acc = jnp.zeros((tq, cout), jnp.float32)
    for kk in range(KK):                     # static unroll over the 9 taps
        ki, kj = kk // K, kk % K
        dy = off_acc[:, 2 * kk:2 * kk + 1]
        dx = off_acc[:, 2 * kk + 1:2 * kk + 2]
        m = jax.nn.sigmoid(off_acc[:, 2 * KK + kk:2 * KK + kk + 1])
        sampled = bilinear_sample(ho * STRIDE - PAD + ki * DIL + dy,
                                  wo * STRIDE - PAD + kj * DIL + dx)
        acc = acc + jnp.dot((sampled * m).astype(mxu_dtype), w_dcn_ref[kk],
                            preferred_element_type=jnp.float32)
    acc = acc + b_dcn_ref[...]               # bn2 scale/shift folded in wrapper
    out_ref[0] = jnp.maximum(acc, 0.0)       # fused ReLU


def _dcn_block(x_rows, w_off, b_off, w_dcn, b_dcn, *,
               height, width, chans, mxu_dtype):
    n = x_rows.shape[0]
    p = height * width
    coff = w_off.shape[-1]
    cout = w_dcn.shape[-1]
    tq = 128 if (p % 128 == 0 and p > 128) else p     # spatial query tile
    kern = functools.partial(_dcn_kernel, height=height, width=width,
                             chans=chans, tq=tq, mxu_dtype=mxu_dtype)
    return pl.pallas_call(
        kern,
        out_shape=jax.ShapeDtypeStruct((n, p, cout), jnp.float32),
        grid=(n, p // tq),
        in_specs=[
            pl.BlockSpec((1, height, width * chans), lambda b, t: (b, 0, 0)),
            pl.BlockSpec((KK, chans, coff), lambda b, t: (0, 0, 0)),
            pl.BlockSpec((1, coff), lambda b, t: (0, 0)),
            pl.BlockSpec((KK, chans, cout), lambda b, t: (0, 0, 0)),
            pl.BlockSpec((1, cout), lambda b, t: (0, 0)),
        ],
        out_specs=pl.BlockSpec((1, tq, cout), lambda b, t: (b, t, 0)),
        compiler_params=pltpu.CompilerParams(
            dimension_semantics=("parallel", "parallel"),
            vmem_limit_bytes=_VMEM_LIMIT),
    )(x_rows, w_off, b_off.reshape(1, coff).astype(jnp.float32),
      w_dcn, b_dcn.reshape(1, cout).astype(jnp.float32))


# ==========================================================================
# Parameters / BN folding / forward
# ==========================================================================
def _fold_bn(gamma, beta, mean, var, eps=1e-5):
    scale = gamma / jnp.sqrt(var + eps)
    return scale, beta - mean * scale


def _rand_bn(key, c):
    k1, k2, k3, k4 = jax.random.split(key, 4)
    return (jax.random.uniform(k1, (c,), jnp.float32, 0.5, 1.5),   # gamma
            0.1 * jax.random.normal(k2, (c,), jnp.float32),        # beta
            0.1 * jax.random.normal(k3, (c,), jnp.float32),        # running mean
            jax.random.uniform(k4, (c,), jnp.float32, 0.5, 1.5))   # running var


def init_params(key, inplanes, planes, offset_scale=0.0):
    ks = jax.random.split(key, 9)
    coff = DG * 3 * KK                               # 27

    def uniform(k, shape, fan_in):
        s = 1.0 / math.sqrt(fan_in)
        return jax.random.uniform(k, shape, jnp.float32, -s, s)

    w1 = uniform(ks[0], (inplanes, planes), inplanes)            # conv1 1x1 (no bias)
    bn1 = _rand_bn(ks[1], planes)
    if offset_scale == 0.0:                                      # module zero-init
        w_off = jnp.zeros((KK, planes, coff), jnp.float32)
        b_off = jnp.zeros((coff,), jnp.float32)
    else:                                                        # test-only nonzero path
        w_off = offset_scale * jax.random.normal(ks[2], (KK, planes, coff), jnp.float32)
        b_off = offset_scale * jax.random.normal(ks[3], (coff,), jnp.float32)
    w_dcn = uniform(ks[4], (KK, planes, planes), planes * KK)    # DCNv2 weight (kk,Ci,Co)
    b_dcn = uniform(ks[5], (planes,), planes * KK)
    bn2 = _rand_bn(ks[6], planes)
    w3 = uniform(ks[7], (planes, 4 * planes), planes)            # conv3 1x1 (no bias)
    bn3 = _rand_bn(ks[8], 4 * planes)
    return (w1, bn1, w_off, b_off, w_dcn, b_dcn, bn2, w3, bn3)


def bottleneck_dcn_forward(x_nchw, params, *, use_bf16=True):
    """BottleneckWithDCN forward (stride=1, downsample=None, use_depth=False,
    BatchNorm in eval mode folded into the adjacent convs)."""
    (w1, bn1, w_off, b_off, w_dcn, b_dcn, bn2, w3, bn3) = params
    mxu_dtype = jnp.bfloat16 if use_bf16 else jnp.float32
    n, cin, h, w = x_nchw.shape
    planes = w1.shape[1]
    assert cin == 4 * planes, "identity residual requires inplanes == 4*planes"

    x = jnp.transpose(x_nchw, (0, 2, 3, 1)).astype(jnp.float32)   # NCHW -> NHWC
    x2d = x.reshape(n * h * w, cin)

    # conv1 (1x1) + bn1 + relu
    s1, t1 = _fold_bn(*bn1)
    y1 = _pointwise_conv(x2d, w1 * s1[None, :], t1, mxu_dtype=mxu_dtype)

    # fused conv_offset_mask + DCNv2 + bn2 + relu
    s2, t2 = _fold_bn(*bn2)
    y2 = _dcn_block(y1.reshape(n, h, w * planes),
                    w_off.astype(mxu_dtype), b_off,
                    (w_dcn * s2[None, None, :]).astype(mxu_dtype),
                    b_dcn * s2 + t2,
                    height=h, width=w, chans=planes, mxu_dtype=mxu_dtype)

    # conv3 (1x1) + bn3 + residual + relu
    s3, t3 = _fold_bn(*bn3)
    out2d = _pointwise_conv(y2.reshape(n * h * w, planes), w3 * s3[None, :], t3,
                            residual=x2d, mxu_dtype=mxu_dtype)
    return jnp.transpose(out2d.reshape(n, h, w, cin), (0, 3, 1, 2))


# ==========================================================================
# Pure-JAX reference (f32, HIGHEST precision) for validation
# ==========================================================================
_HI = lax.Precision.HIGHEST


def _ref_conv3x3_same(x, w_kk, b):
    n, h, w, _ = x.shape
    xp = jnp.pad(x, ((0, 0), (PAD, PAD), (PAD, PAD), (0, 0)))
    acc = jnp.zeros((n, h, w, w_kk.shape[-1]), jnp.float32) + b
    for kk in range(KK):
        ki, kj = kk // K, kk % K
        acc = acc + jnp.einsum('nhwc,cd->nhwd', xp[:, ki:ki + h, kj:kj + w, :],
                               w_kk[kk], precision=_HI)
    return acc


def _ref_dcnv2(x, offset, mask, w_kk, b):
    n, h, w, c = x.shape
    xf = x.reshape(n, h * w, c)
    ho = jnp.arange(h, dtype=jnp.float32)[None, :, None]
    wo = jnp.arange(w, dtype=jnp.float32)[None, None, :]
    out = jnp.zeros((n, h, w, w_kk.shape[-1]), jnp.float32) + b
    for kk in range(KK):
        ki, kj = kk // K, kk % K
        h_im = ho * STRIDE - PAD + ki * DIL + offset[..., 2 * kk]
        w_im = wo * STRIDE - PAD + kj * DIL + offset[..., 2 * kk + 1]
        valid = (h_im > -1) & (w_im > -1) & (h_im < h) & (w_im < w)
        h0 = jnp.floor(h_im)
        w0 = jnp.floor(w_im)
        lh = h_im - h0
        lw = w_im - w0

        def corner(hc, wc, wt):
            inb = (hc >= 0) & (hc <= h - 1) & (wc >= 0) & (wc <= w - 1)
            flat = (jnp.clip(hc, 0, h - 1).astype(jnp.int32) * w +
                    jnp.clip(wc, 0, w - 1).astype(jnp.int32))
            g = jnp.take_along_axis(
                xf, jnp.broadcast_to(flat.reshape(n, h * w, 1), (n, h * w, c)),
                axis=1).reshape(n, h, w, c)
            return g * jnp.where(valid & inb, wt, 0.0)[..., None]

        samp = (corner(h0, w0, (1 - lh) * (1 - lw)) +
                corner(h0, w0 + 1.0, (1 - lh) * lw) +
                corner(h0 + 1.0, w0, lh * (1 - lw)) +
                corner(h0 + 1.0, w0 + 1.0, lh * lw))
        cols = samp * mask[..., kk][..., None]
        out = out + jnp.einsum('nhwc,cd->nhwd', cols, w_kk[kk], precision=_HI)
    return out


def ref_forward(x_nchw, params):
    (w1, bn1, w_off, b_off, w_dcn, b_dcn, bn2, w3, bn3) = params
    x = jnp.transpose(x_nchw, (0, 2, 3, 1)).astype(jnp.float32)
    s1, t1 = _fold_bn(*bn1)
    y1 = jnp.maximum(jnp.einsum('nhwc,cd->nhwd', x, w1, precision=_HI) * s1 + t1, 0.0)
    om = _ref_conv3x3_same(y1, w_off, b_off)
    offset = om[..., :2 * KK]
    mask = jax.nn.sigmoid(om[..., 2 * KK:])
    s2, t2 = _fold_bn(*bn2)
    y2 = jnp.maximum(_ref_dcnv2(y1, offset, mask, w_dcn, b_dcn) * s2 + t2, 0.0)
    s3, t3 = _fold_bn(*bn3)
    out = jnp.maximum(jnp.einsum('nhwc,cd->nhwd', y2, w3, precision=_HI) * s3 + t3 + x,
                      0.0)
    return jnp.transpose(out, (0, 3, 1, 2))


# ==========================================================================
if __name__ == "__main__":
    key = jax.random.PRNGKey(0)
    n, planes, h, w = 2, 4, 16, 16
    inplanes = 4 * planes                     # downsample=None => identity residual
    kx, kp = jax.random.split(key)
    x = jax.random.normal(kx, (n, inplanes, h, w), jnp.float32)

    # (a) module-faithful parameters: conv_offset_mask zero-initialized
    params = init_params(kp, inplanes, planes, offset_scale=0.0)
    ref = ref_forward(x, params)
    # f32 MXU path checked tight; bf16 MXU path gets a tolerance sized for bf16.
    for use_bf16, tol in ((False, 1e-3), (True, 4e-2)):
        out = jax.block_until_ready(
            bottleneck_dcn_forward(x, params, use_bf16=use_bf16))
        assert out.shape == (n, inplanes, h, w)
        err = float(jnp.max(jnp.abs(out - ref)))
        if not bool(jnp.allclose(out, ref, atol=tol, rtol=tol)):
            raise AssertionError(
                f"zero-offset mismatch (bf16={use_bf16}): max abs err = {err}")

    # (b) non-zero offset/mask weights: exercises the bilinear sampling path
    params_nz = init_params(kp, inplanes, planes, offset_scale=0.3)
    ref_nz = ref_forward(x, params_nz)
    out_nz = jax.block_until_ready(
        bottleneck_dcn_forward(x, params_nz, use_bf16=False))
    err = float(jnp.max(jnp.abs(out_nz - ref_nz)))
    if not bool(jnp.allclose(out_nz, ref_nz, atol=1e-3, rtol=1e-3)):
        raise AssertionError(f"nonzero-offset mismatch: max abs err = {err}")

    print("KERNEL_OK")
</pallas_src>

<mosaic_0001>
module attributes {stable_mosaic.version = 11 : i64} {
  func.func @_mm_bias_act_kernel(%arg0: i32, %arg1: memref<256x16xf32, #tpu.memory_space<vmem>>, %arg2: memref<16x4xf32, #tpu.memory_space<vmem>>, %arg3: memref<1x4xf32, #tpu.memory_space<vmem>>, %arg4: memref<256x4xf32, #tpu.memory_space<vmem>>) attributes {dimension_semantics = [#tpu.dimension_semantics<parallel>], iteration_bounds = array<i64: 2>, scalar_prefetch = 0 : i64, scratch_operands = 0 : i64, tpu.core_type = #tpu.core_type<tc>, window_params = [{transform_indices = @transform_0, window_bounds = array<i64: 256, 16>}, {pipeline_mode = #tpu.pipeline_mode<synchronous>, transform_indices = @transform_1, window_bounds = array<i64: 16, 4>}, {pipeline_mode = #tpu.pipeline_mode<synchronous>, transform_indices = @transform_2, window_bounds = array<i64: 1, 4>}, {transform_indices = @transform_3, window_bounds = array<i64: 256, 4>}]} {
    %c0 = arith.constant 0 : index
    %c0_0 = arith.constant 0 : index
    %0 = vector.load %arg1[%c0, %c0_0] : memref<256x16xf32, #tpu.memory_space<vmem>>, vector<256x16xf32>
    %c0_1 = arith.constant 0 : index
    %c0_2 = arith.constant 0 : index
    %1 = vector.load %arg2[%c0_1, %c0_2] : memref<16x4xf32, #tpu.memory_space<vmem>>, vector<16x4xf32>
    %cst = arith.constant dense<0.000000e+00> : vector<256x4xf32>
    %2 = tpu.matmul %0, %1, %cst {dimension_numbers = #tpu.dot_dimension_numbers<[1], [0], [0], [1], [0, 0, 1, 1], [], []>} : vector<256x16xf32>, vector<16x4xf32>, vector<256x4xf32> -> vector<256x4xf32>
    %c0_3 = arith.constant 0 : index
    %c0_4 = arith.constant 0 : index
    %3 = vector.load %arg3[%c0_3, %c0_4] : memref<1x4xf32, #tpu.memory_space<vmem>>, vector<1x4xf32>
    %4 = vector.broadcast %3 : vector<1x4xf32> to vector<256x4xf32>
    %5 = arith.addf %2, %4 : vector<256x4xf32>
    %cst_5 = arith.constant 0.000000e+00 : f32
    %6 = vector.broadcast %cst_5 : f32 to vector<256x4xf32>
    %7 = arith.maximumf %5, %6 : vector<256x4xf32>
    %c0_6 = arith.constant 0 : index
    %c0_7 = arith.constant 0 : index
    %8 = vector.load %arg4[%c0_6, %c0_7] : memref<256x4xf32, #tpu.memory_space<vmem>>, vector<256x4xf32>
    tpu.vector_store %arg4[%c0_6, %c0_7], %7 {strides = array<i32>} : memref<256x4xf32, #tpu.memory_space<vmem>>, vector<256x4xf32>,
    return
  }
  func.func @transform_0(%arg0: i32) -> (i32, i32) {
    %c0_i32 = arith.constant 0 : i32
    %c0_i32_0 = arith.constant 0 : i32
    return %arg0, %c0_i32 : i32, i32
  }
  func.func @transform_1(%arg0: i32) -> (i32, i32) {
    %c0_i32 = arith.constant 0 : i32
    %c0_i32_0 = arith.constant 0 : i32
    %c0_i32_1 = arith.constant 0 : i32
    return %c0_i32, %c0_i32_0 : i32, i32
  }
  func.func @transform_2(%arg0: i32) -> (i32, i32) {
    %c0_i32 = arith.constant 0 : i32
    %c0_i32_0 = arith.constant 0 : i32
    %c0_i32_1 = arith.constant 0 : i32
    return %c0_i32, %c0_i32_0 : i32, i32
  }
  func.func @transform_3(%arg0: i32) -> (i32, i32) {
    %c0_i32 = arith.constant 0 : i32
    %c0_i32_0 = arith.constant 0 : i32
    return %arg0, %c0_i32 : i32, i32
  }
}

</mosaic_0001>

<llo_original>
// kernel: tpu_custom_call.1
$region0: #{tpu_custom_call.1}
  #allocation0 [shape = 'u32[]', space=smem, size = 0x4, offset = 0x4, fixed_abs, tag = 'smem constant byte address 0x4 - core index']
  #allocation1 [shape = 'u32[144,128]{1,0:T(1,128)}', space=vmem, size = 0x12000, scoped, tag = 'internal scratch']
  %s0 = inlined_call_operand.hbm [shape: f32[512,16], index: 0, kind: input, shape index: {}]
  %s1 = inlined_call_operand.hbm [shape: f32[16,4], index: 1, kind: input, shape index: {}]
  %s2 = inlined_call_operand.hbm [shape: f32[1,4], index: 2, kind: input, shape index: {}]
  %s3 = inlined_call_operand.hbm [shape: f32[512,4], index: 3, kind: output, shape index: {}]
  %s4 = sld [smem:[#allocation0]]
  $region57: #{tpu_custom_call.1} parent=0
    _
  %s6 = ssub.s32 1, %s4
  %s7 = scalar_select 0, %s6, %s4
  $region1: #{tpu_custom_call.1} parent=0
    #allocation2 [shape = 'u8[262144]{0}', space=vmem, size = 0x40000, scoped, tag = 'input window, operand 0']
    #allocation3 [shape = 's32[2]{0}', space=sflag, size = 0x8, scoped, tag = 'scoped memory for tpu_custom_call.1']
    #allocation4 [shape = 's32[2]{0}', space=sflag, size = 0x8, scoped, tag = 'scoped memory for tpu_custom_call.1']
    #allocation5 [shape = 'u8[8192]{0}', space=vmem, size = 0x2000, scoped, tag = 'input window, operand 1, single buffered']
    #allocation6 [shape = 's32[1]{0}', space=sflag, size = 0x4, scoped, tag = 'scoped memory for tpu_custom_call.1']
    #allocation7 [shape = 'u8[512]{0}', space=vmem, size = 0x400, scoped, tag = 'input window, operand 2, single buffered']
    #allocation8 [shape = 'u8[262144]{0}', space=vmem, size = 0x40000, scoped, tag = 'output window, operand 0']
    %8 = vsyncpa [#allocation3], 0
    %s9 = scalar_lea.sflag [#allocation3], 1
    %10 = vsyncpa %s9, 0
    %11 = vsyncpa [#allocation6], 0
    %12 = vsyncpa [#allocation4], 0
    %s13 = scalar_lea.sflag [#allocation4], 1
    %14 = vsyncpa %s13, 0
    loop: start=0, step=1, limit=4
    $region2: #{tpu_custom_call.1} parent=1 // loop_pre_header
      _
    $region3: #{tpu_custom_call.1} parent=1 // loop_header
      %s16 = sphi 0, %s20
      %p17 = scmp.ge.s32.totalorder %s16, 4
      %s26 = sphi 0, %s28
      %s29 = sphi 0, %s26
      %s30 = sphi 0, %s29
      %s46 = sphi 0, %s30
      %s50 = sphi 0, %s50
      %s52 = sphi 0, %s50
      %s53 = sphi 0, %s52
      %s67 = sphi 0, %s53
      %s71 = sphi 0, %s71
      %s73 = sphi 0, %s71
      %s74 = sphi 0, %s73
      %s88 = sphi 0, %s74
      %s94 = sphi 0, %s96
      %s97 = sphi 0, %s94
      %s98 = sphi 0, %s97
      %s114 = sphi 0, %s98
    $region4: #{tpu_custom_call.1} parent=1 // loop_header_branch
      %19 = sbr.rel (%p17) target = $region8
    $region5: #{tpu_custom_call.1} parent=1 // loop_body
      %s21 = ssub.s32 %s16, 1
      %s22 = ssub.s32 %s16, 2
      %s23 = sadd.s32 %s16, 1
      %s24 = ssub.s32 %s16, %s23
      %p25 = scmp.eq.s32.totalorder %s24, 0
      %s27 = sadd.s32 %s26, 1
      %s28 = scalar_select %p25, %s26, %s27
      %p31 = pneg %p25
      %p32 = scmp.eq.s32.totalorder %s16, 1
      %p33 = por %p31, %p32
      %p34 = scmp.ne.s32.totalorder %s26, %s29
      %p35 = scmp.eq.s32.totalorder %s16, 0
      %p36 = por %p34, %p35
      %p37 = scmp.ne.s32.totalorder %s26, %s29
      %p38 = scmp.eq.s32.totalorder %s21, 1
      %p39 = por %p37, %p38
      %p40 = scmp.ne.s32.totalorder %s29, %s30
      %p41 = scmp.eq.s32.totalorder %s21, 0
      %p42 = por %p40, %p41
      %p43 = scmp.ne.s32.totalorder %s29, %s30
      %p44 = scmp.eq.s32.totalorder %s22, 1
      %p45 = por %p43, %p44
      %p47 = scmp.ne.s32.totalorder %s30, %s46
      %p48 = scmp.eq.s32.totalorder %s22, 0
      %p49 = por %p47, %p48
      %s51 = sadd.s32 %s50, 1
      %p54 = scmp.eq.s32.totalorder %s16, 1
      %p55 = scmp.ne.s32.totalorder %s50, %s52
      %p56 = scmp.eq.s32.totalorder %s16, 0
      %p57 = por %p55, %p56
      %p58 = scmp.ne.s32.totalorder %s50, %s52
      %p59 = scmp.eq.s32.totalorder %s21, 1
      %p60 = por %p58, %p59
      %p61 = scmp.ne.s32.totalorder %s52, %s53
      %p62 = scmp.eq.s32.totalorder %s21, 0
      %p63 = por %p61, %p62
      %p64 = scmp.ne.s32.totalorder %s52, %s53
      %p65 = scmp.eq.s32.totalorder %s22, 1
      %p66 = por %p64, %p65
      %p68 = scmp.ne.s32.totalorder %s53, %s67
      %p69 = scmp.eq.s32.totalorder %s22, 0
      %p70 = por %p68, %p69
      %s72 = sadd.s32 %s71, 1
      %p75 = scmp.eq.s32.totalorder %s16, 1
      %p76 = scmp.ne.s32.totalorder %s71, %s73
      %p77 = scmp.eq.s32.totalorder %s16, 0
      %p78 = por %p76, %p77
      %p79 = scmp.ne.s32.totalorder %s71, %s73
      %p80 = scmp.eq.s32.totalorder %s21, 1
      %p81 = por %p79, %p80
      %p82 = scmp.ne.s32.totalorder %s73, %s74
      %p83 = scmp.eq.s32.totalorder %s21, 0
      %p84 = por %p82, %p83
      %p85 = scmp.ne.s32.totalorder %s73, %s74
      %p86 = scmp.eq.s32.totalorder %s22, 1
      %p87 = por %p85, %p86
      %p89 = scmp.ne.s32.totalorder %s74, %s88
      %p90 = scmp.eq.s32.totalorder %s22, 0
      %p91 = por %p89, %p90
      %s92 = ssub.s32 %s16, %s23
      %p93 = scmp.eq.s32.totalorder %s92, 0
      %s95 = sadd.s32 %s94, 1
      %s96 = scalar_select %p93, %s94, %s95
      %p99 = pneg %p93
      %p100 = scmp.eq.s32.totalorder %s16, 1
      %p101 = por %p99, %p100
      %p102 = scmp.ne.s32.totalorder %s94, %s97
      %p103 = scmp.eq.s32.totalorder %s16, 0
      %p104 = por %p102, %p103
      %p105 = scmp.ne.s32.totalorder %s94, %s97
      %p106 = scmp.eq.s32.totalorder %s21, 1
      %p107 = por %p105, %p106
      %p108 = scmp.ne.s32.totalorder %s97, %s98
      %p109 = scmp.eq.s32.totalorder %s21, 0
      %p110 = por %p108, %p109
      %p111 = scmp.ne.s32.totalorder %s97, %s98
      %p112 = scmp.eq.s32.totalorder %s22, 1
      %p113 = por %p111, %p112
      %p115 = scmp.ne.s32.totalorder %s98, %s114
      %p116 = scmp.eq.s32.totalorder %s22, 0
      %p117 = por %p115, %p116
      %p118 = scmp.le.s32.totalorder 1, %s16
      %p119 = scmp.lt.s32.totalorder %s16, 3
      %p120 = pnand %p118, %p119
      %p121 = pneg %p120
      // Predicated region
      $region9: #{tpu_custom_call.1} parent=5 // pred_check
        _
      $region10: #{tpu_custom_call.1} parent=5 // pred_check_branch
        %123 = sbr.rel (%p120) target = $region12
      $region11: #{tpu_custom_call.1} parent=5 // pred_region
        %s124 = ssub.s32 %s16, 1
        // Predicated region
        $region13: #{tpu_custom_call.1} parent=11 // pred_check
          %p125 = pneg %p63
        $region14: #{tpu_custom_call.1} parent=11 // pred_check_branch
          %127 = sbr.rel (%p125) target = $region16
        $region15: #{tpu_custom_call.1} parent=11 // pred_region
          %s129 = ssub.s32 256, 256
          %130 = vsyncadd [#allocation6], %s129
          %s131 = sshll.u32 [#allocation5], 4
          %s132 = int_to_ptr.vmem [resolvable:$true] %s131
          %137 = dma.hbm_to_vmem [thread:$0]  %s1, 256, %s132, [#allocation6], 128, 128, 8
        $region16: #{tpu_custom_call.1} parent=11 // pred_fallthru
          _
        // Predicated region
        $region17: #{tpu_custom_call.1} parent=11 // pred_check
          %p138 = pneg %p84
        $region18: #{tpu_custom_call.1} parent=11 // pred_check_branch
          %140 = sbr.rel (%p138) target = $region20
        $region19: #{tpu_custom_call.1} parent=11 // pred_region
          %s142 = ssub.s32 16, 16
          %143 = vsyncadd [#allocation6], %s142
          %s145 = sshll.u32 [#allocation7], 4
          %s146 = int_to_ptr.vmem [resolvable:$true] %s145
          %148 = dma.hbm_to_vmem [thread:$0]  %s2, 16, %s146, [#allocation6]
        $region20: #{tpu_custom_call.1} parent=11 // pred_fallthru
          _
      $region12: #{tpu_custom_call.1} parent=5 // pred_fallthru
        _
      %p149 = scmp.lt.s32.totalorder %s16, 2
      // Predicated region
      $region21: #{tpu_custom_call.1} parent=5 // pred_check
        %p150 = pneg %p149
      $region22: #{tpu_custom_call.1} parent=5 // pred_check_branch
        %152 = sbr.rel (%p150) target = $region24
      $region23: #{tpu_custom_call.1} parent=5 // pred_region
        // Predicated region
        $region25: #{tpu_custom_call.1} parent=23 // pred_check
          %p153 = pneg %p36
        $region26: #{tpu_custom_call.1} parent=23 // pred_check_branch
          %155 = sbr.rel (%p153) target = $region28
        $region27: #{tpu_custom_call.1} parent=23 // pred_region
          %s156 = sand.u32 %s26, 1
          %s157 = scalar_lea.sflag [#allocation3], %s156
          %s158 = sand.u32 %s26, 1
          %s159 = smul.addr %s158, 256
          %s160 = scalar_lea.vmem [#allocation2], %s159
          %s161 = smul.u32 32, %s16
          %s163 = ssub.s32 4096, 4096
          %164 = vsyncadd %s157, %s163
          %s165 = smul.addr %s161, 128
          %s166 = scalar_lea.hbm %s0, %s165
          %s167 = sshll.u32 %s160, 4
          %s168 = int_to_ptr.vmem [resolvable:$true] %s167
          %173 = dma.hbm_to_vmem [thread:$0]  %s166, 4096, %s168, %s157, 128, 128, 8
        $region28: #{tpu_custom_call.1} parent=23 // pred_fallthru
          _
      $region24: #{tpu_custom_call.1} parent=5 // pred_fallthru
        _
      %p174 = scmp.le.s32.totalorder 1, %s16
      %p175 = scmp.lt.s32.totalorder %s16, 3
      %p176 = pnand %p174, %p175
      %p177 = pneg %p176
      // Predicated region
      $region29: #{tpu_custom_call.1} parent=5 // pred_check
        _
      $region30: #{tpu_custom_call.1} parent=5 // pred_check_branch
        %179 = sbr.rel (%p176) target = $region32
      $region31: #{tpu_custom_call.1} parent=5 // pred_region
        %s180 = ssub.s32 %s16, 1
        %s181 = sand.u32 %s29, 1
        %s182 = scalar_lea.sflag [#allocation3], %s181
        %s183 = sand.u32 %s29, 1
        %s184 = smul.addr %s183, 256
        %s185 = scalar_lea.vmem [#allocation2], %s184
        // Predicated region
        $region33: #{tpu_custom_call.1} parent=31 // pred_check
          %p186 = pneg %p42
        $region34: #{tpu_custom_call.1} parent=31 // pred_check_branch
          %188 = sbr.rel (%p186) target = $region36
        $region35: #{tpu_custom_call.1} parent=31 // pred_region
          %189 = dma.done %s182, 4096
        $region36: #{tpu_custom_call.1} parent=31 // pred_fallthru
          _
        // Predicated region
        $region37: #{tpu_custom_call.1} parent=31 // pred_check
          %p190 = pneg %p63
        $region38: #{tpu_custom_call.1} parent=31 // pred_check_branch
          %192 = sbr.rel (%p190) target = $region40
        $region39: #{tpu_custom_call.1} parent=31 // pred_region
          %193 = dma.done [#allocation6], 256
        $region40: #{tpu_custom_call.1} parent=31 // pred_fallthru
          _
        // Predicated region
        $region41: #{tpu_custom_call.1} parent=31 // pred_check
          %p194 = pneg %p84
        $region42: #{tpu_custom_call.1} parent=31 // pred_check_branch
          %196 = sbr.rel (%p194) target = $region44
        $region43: #{tpu_custom_call.1} parent=31 // pred_region
          %197 = dma.done [#allocation6], 16
        $region44: #{tpu_custom_call.1} parent=31 // pred_fallthru
          _
        %s198 = sand.u32 %s29, 1
        %s199 = scalar_lea.sflag [#allocation3], %s198
        %s200 = sand.u32 %s29, 1
        %s201 = smul.addr %s200, 256
        %s202 = scalar_lea.vmem [#allocation2], %s201
        %p203 = pneg %p42
        %p204 = pneg %p39
        %p205 = pneg %p63
        %p206 = pneg %p60
        %p207 = pneg %p84
        %p208 = pneg %p81
        %p209 = pneg %p110
        %p210 = pneg %p107
        %s211 = sand.u32 %s97, 1
        %s212 = scalar_lea.sflag [#allocation4], %s211
        %s213 = sand.u32 %s97, 1
        %s214 = smul.addr %s213, 256
        %s215 = scalar_lea.vmem [#allocation8], %s214
        %s216 = smul.u32 32, %s21
        %s217 = smul.u32 32, %s21
        %v218 = vld [vmem:[%s185] sm:$0xff]
        %v219 = vld [vmem:[%s185 + $0x8] sm:$0xff]
        %v220 = vld [vmem:[%s185 + $0x10] sm:$0xff]
        %v221 = vld [vmem:[%s185 + $0x18] sm:$0xff]
        %v222 = vld [vmem:[%s185 + $0x20] sm:$0xff]
        %v223 = vld [vmem:[%s185 + $0x28] sm:$0xff]
        %v224 = vld [vmem:[%s185 + $0x30] sm:$0xff]
        %v225 = vld [vmem:[%s185 + $0x38] sm:$0xff]
        %v226 = vld [vmem:[%s185 + $0x40] sm:$0xff]
        %v227 = vld [vmem:[%s185 + $0x48] sm:$0xff]
        %v228 = vld [vmem:[%s185 + $0x50] sm:$0xff]
        %v229 = vld [vmem:[%s185 + $0x58] sm:$0xff]
        %v230 = vld [vmem:[%s185 + $0x60] sm:$0xff]
        %v231 = vld [vmem:[%s185 + $0x68] sm:$0xff]
        %v232 = vld [vmem:[%s185 + $0x70] sm:$0xff]
        %v233 = vld [vmem:[%s185 + $0x78] sm:$0xff]
        %v234 = vld [vmem:[%s185 + $0x80] sm:$0xff]
        %v235 = vld [vmem:[%s185 + $0x88] sm:$0xff]
        %v236 = vld [vmem:[%s185 + $0x90] sm:$0xff]
        %v237 = vld [vmem:[%s185 + $0x98] sm:$0xff]
        %v238 = vld [vmem:[%s185 + $0xa0] sm:$0xff]
        %v239 = vld [vmem:[%s185 + $0xa8] sm:$0xff]
        %v240 = vld [vmem:[%s185 + $0xb0] sm:$0xff]
        %v241 = vld [vmem:[%s185 + $0xb8] sm:$0xff]
        %v242 = vld [vmem:[%s185 + $0xc0] sm:$0xff]
        %v243 = vld [vmem:[%s185 + $0xc8] sm:$0xff]
        %v244 = vld [vmem:[%s185 + $0xd0] sm:$0xff]
        %v245 = vld [vmem:[%s185 + $0xd8] sm:$0xff]
        %v246 = vld [vmem:[%s185 + $0xe0] sm:$0xff]
        %v247 = vld [vmem:[%s185 + $0xe8] sm:$0xff]
        %v248 = vld [vmem:[%s185 + $0xf0] sm:$0xff]
        %v249 = vld [vmem:[%s185 + $0xf8] sm:$0xff]
        %v250 = vld [vmem:[#allocation5] sm:$0xff]
        %v251 = vld [vmem:[#allocation5 + $0x8] sm:$0xff]
        %v252 = vld [vmem:[#allocation7] sm:$0x1]
        %v254 = vlaneseq
        %v255 = vshrl.u32 %v254, 7
        %v256 = vsub.s32 0, %v255
        %v257 = vrot.slane %v252, %v256
        %vm259 = vcmask 130048
        %v261 = vsel %vm259, %v218, 0
        %v264 = vsel %vm259, %v219, 0
        %v267 = vsel %vm259, %v220, 0
        %v270 = vsel %vm259, %v221, 0
        %v273 = vsel %vm259, %v222, 0
        %v276 = vsel %vm259, %v223, 0
        %v279 = vsel %vm259, %v224, 0
        %v282 = vsel %vm259, %v225, 0
        %v285 = vsel %vm259, %v226, 0
        %v288 = vsel %vm259, %v227, 0
        %v291 = vsel %vm259, %v228, 0
        %v294 = vsel %vm259, %v229, 0
        %v297 = vsel %vm259, %v230, 0
        %v300 = vsel %vm259, %v231, 0
        %v303 = vsel %vm259, %v232, 0
        %v306 = vsel %vm259, %v233, 0
        %v309 = vsel %vm259, %v234, 0
        %v312 = vsel %vm259, %v235, 0
        %v315 = vsel %vm259, %v236, 0
        %v318 = vsel %vm259, %v237, 0
        %v321 = vsel %vm259, %v238, 0
        %v324 = vsel %vm259, %v239, 0
        %v327 = vsel %vm259, %v240, 0
        %v330 = vsel %vm259, %v241, 0
        %v333 = vsel %vm259, %v242, 0
        %v336 = vsel %vm259, %v243, 0
        %v339 = vsel %vm259, %v244, 0
        %v342 = vsel %vm259, %v245, 0
        %v345 = vsel %vm259, %v246, 0
        %v348 = vsel %vm259, %v247, 0
        %v351 = vsel %vm259, %v248, 0
        %v354 = vsel %vm259, %v249, 0
        %356 = vmatprep.subr.mxu0 0.0
        %357 = vmatpush1.msra.mxu0 %v250
        %358 = vmatprep.subr.mxu0 0.0
        %359 = vmatpush1.msra.mxu0 %v251
        %360 = vmatprep.subr.mxu0 0.0
        %361 = vmatpush1.msra.mxu0 0.0
        %362 = vmatprep.subr.mxu0 0.0
        %363 = vmatpush1.msra.mxu0 0.0
        %364 = vmatprep.subr.mxu0 0.0
        %365 = vmatpush1.msra.mxu0 0.0
        %366 = vmatprep.subr.mxu0 0.0
        %367 = vmatpush1.msra.mxu0 0.0
        %368 = vmatprep.subr.mxu0 0.0
        %369 = vmatpush1.msra.mxu0 0.0
        %370 = vmatprep.subr.mxu0 0.0
        %371 = vmatpush1.msra.mxu0 0.0
        %372 = vmatprep.subr.mxu0 0.0
        %373 = vmatpush1.msra.mxu0 0.0
        %374 = vmatprep.subr.mxu0 0.0
        %375 = vmatpush1.msra.mxu0 0.0
        %376 = vmatprep.subr.mxu0 0.0
        %377 = vmatpush1.msra.mxu0 0.0
        %378 = vmatprep.subr.mxu0 0.0
        %379 = vmatpush1.msra.mxu0 0.0
        %380 = vmatprep.subr.mxu0 0.0
        %381 = vmatpush1.msra.mxu0 0.0
        %382 = vmatprep.subr.mxu0 0.0
        %383 = vmatpush1.msra.mxu0 0.0
        %384 = vmatprep.subr.mxu0 0.0
        %385 = vmatpush1.msra.mxu0 0.0
        %386 = vmatprep.subr.mxu0 0.0
        %387 = vmatpush1.msra.mxu0 0.0
        %388 = vmatprep.subr.mxu0 0.0
        %389 = vmatpush1.msra.mxu0 0.0
        %390 = vmatprep.subr.mxu0 0.0
        %391 = vmatpush1.msra.mxu0 0.0
        %392 = vmatprep.subr.mxu0 0.0
        %393 = vmatpush1.msra.mxu0 0.0
        %394 = vmatprep.subr.mxu0 0.0
        %395 = vmatpush1.msra.mxu0 0.0
        %396 = vmatprep.subr.mxu0 0.0
        %397 = vmatpush1.msra.mxu0 0.0
        %398 = vmatprep.subr.mxu0 0.0
        %399 = vmatpush1.msra.mxu0 0.0
        %400 = vmatprep.subr.mxu0 0.0
        %401 = vmatpush1.msra.mxu0 0.0
        %402 = vmatprep.subr.mxu0 0.0
        %403 = vmatpush1.msra.mxu0 0.0
        %404 = vmatprep.subr.mxu0 0.0
        %405 = vmatpush1.msra.mxu0 0.0
        %406 = vmatprep.subr.mxu0 0.0
        %407 = vmatpush1.msra.mxu0 0.0
        %408 = vmatprep.subr.mxu0 0.0
        %409 = vmatpush1.msra.mxu0 0.0
        %410 = vmatprep.subr.mxu0 0.0
        %411 = vmatpush1.msra.mxu0 0.0
        %412 = vmatprep.subr.mxu0 0.0
        %413 = vmatpush1.msra.mxu0 0.0
        %414 = vmatprep.subr.mxu0 0.0
        %415 = vmatpush1.msra.mxu0 0.0
        %416 = vmatprep.subr.mxu0 0.0
        %417 = vmatpush1.msra.mxu0 0.0
        %418 = vmatprep.subr.mxu0 0.0
        %419 = vmatpush1.msra.mxu0 0.0
        %420 = vmatprep.mubr.f32.mxu0 0.0
        %421 = vmatmul.mubr.f32.gmra.mrb[0].mxu0 %v261
        %v422 = vpop.f32.mrb[0].mxu0
        %v423 = vadd.f32 %v257, %v422
        %v424 = vpop.f32.mrb[0].mxu0
        %425 = vmatprep.mubr.f32.mxu0 0.0
        %426 = vmatmul.mubr.f32.gmra.mrb[0].mxu0 %v264
        %v427 = vpop.f32.mrb[0].mxu0
        %v428 = vadd.f32 %v257, %v427
        %v429 = vpop.f32.mrb[0].mxu0
        %430 = vmatprep.mubr.f32.mxu0 0.0
        %431 = vmatmul.mubr.f32.gmra.mrb[0].mxu0 %v267
        %v432 = vpop.f32.mrb[0].mxu0
        %v433 = vadd.f32 %v257, %v432
        %v434 = vpop.f32.mrb[0].mxu0
        %435 = vmatprep.mubr.f32.mxu0 0.0
        %436 = vmatmul.mubr.f32.gmra.mrb[0].mxu0 %v270
        %v437 = vpop.f32.mrb[0].mxu0
        %v438 = vadd.f32 %v257, %v437
        %v439 = vpop.f32.mrb[0].mxu0
        %440 = vmatprep.mubr.f32.mxu0 0.0
        %441 = vmatmul.mubr.f32.gmra.mrb[0].mxu0 %v273
        %v442 = vpop.f32.mrb[0].mxu0
        %v443 = vadd.f32 %v257, %v442
        %v444 = vpop.f32.mrb[0].mxu0
        %445 = vmatprep.mubr.f32.mxu0 0.0
        %446 = vmatmul.mubr.f32.gmra.mrb[0].mxu0 %v276
        %v447 = vpop.f32.mrb[0].mxu0
        %v448 = vadd.f32 %v257, %v447
        %v449 = vpop.f32.mrb[0].mxu0
        %450 = vmatprep.mubr.f32.mxu0 0.0
        %451 = vmatmul.mubr.f32.gmra.mrb[0].mxu0 %v279
        %v452 = vpop.f32.mrb[0].mxu0
        %v453 = vadd.f32 %v257, %v452
        %v454 = vpop.f32.mrb[0].mxu0
        %455 = vmatprep.mubr.f32.mxu0 0.0
        %456 = vmatmul.mubr.f32.gmra.mrb[0].mxu0 %v282
        %v457 = vpop.f32.mrb[0].mxu0
        %v458 = vadd.f32 %v257, %v457
        %v459 = vpop.f32.mrb[0].mxu0
        %460 = vmatprep.mubr.f32.mxu0 0.0
        %461 = vmatmul.mubr.f32.gmra.mrb[0].mxu0 %v285
        %v462 = vpop.f32.mrb[0].mxu0
        %v463 = vadd.f32 %v257, %v462
        %v464 = vpop.f32.mrb[0].mxu0
        %465 = vmatprep.mubr.f32.mxu0 0.0
        %466 = vmatmul.mubr.f32.gmra.mrb[0].mxu0 %v288
        %v467 = vpop.f32.mrb[0].mxu0
        %v468 = vadd.f32 %v257, %v467
        %v469 = vpop.f32.mrb[0].mxu0
        %470 = vmatprep.mubr.f32.mxu0 0.0
        %471 = vmatmul.mubr.f32.gmra.mrb[0].mxu0 %v291
        %v472 = vpop.f32.mrb[0].mxu0
        %v473 = vadd.f32 %v257, %v472
        %v474 = vpop.f32.mrb[0].mxu0
        %475 = vmatprep.mubr.f32.mxu0 0.0
        %476 = vmatmul.mubr.f32.gmra.mrb[0].mxu0 %v294
        %v477 = vpop.f32.mrb[0].mxu0
        %v478 = vadd.f32 %v257, %v477
        %v479 = vpop.f32.mrb[0].mxu0
        %480 = vmatprep.mubr.f32.mxu0 0.0
        %481 = vmatmul.mubr.f32.gmra.mrb[0].mxu0 %v297
        %v482 = vpop.f32.mrb[0].mxu0
        %v483 = vadd.f32 %v257, %v482
        %v484 = vpop.f32.mrb[0].mxu0
        %485 = vmatprep.mubr.f32.mxu0 0.0
        %486 = vmatmul.mubr.f32.gmra.mrb[0].mxu0 %v300
        %v487 = vpop.f32.mrb[0].mxu0
        %v488 = vadd.f32 %v257, %v487
        %v489 = vpop.f32.mrb[0].mxu0
        %490 = vmatprep.mubr.f32.mxu0 0.0
        %491 = vmatmul.mubr.f32.gmra.mrb[0].mxu0 %v303
        %v492 = vpop.f32.mrb[0].mxu0
        %v493 = vadd.f32 %v257, %v492
        %v494 = vpop.f32.mrb[0].mxu0
        %495 = vmatprep.mubr.f32.mxu0 0.0
        %496 = vmatmul.mubr.f32.gmra.mrb[0].mxu0 %v306
        %v497 = vpop.f32.mrb[0].mxu0
        %v498 = vadd.f32 %v257, %v497
        %v499 = vpop.f32.mrb[0].mxu0
        %500 = vmatprep.mubr.f32.mxu0 0.0
        %501 = vmatmul.mubr.f32.gmra.mrb[0].mxu0 %v309
        %v502 = vpop.f32.mrb[0].mxu0
        %v503 = vadd.f32 %v257, %v502
        %v504 = vpop.f32.mrb[0].mxu0
        %505 = vmatprep.mubr.f32.mxu0 0.0
        %506 = vmatmul.mubr.f32.gmra.mrb[0].mxu0 %v312
        %v507 = vpop.f32.mrb[0].mxu0
        %v508 = vadd.f32 %v257, %v507
        %v509 = vpop.f32.mrb[0].mxu0
        %510 = vmatprep.mubr.f32.mxu0 0.0
        %511 = vmatmul.mubr.f32.gmra.mrb[0].mxu0 %v315
        %v512 = vpop.f32.mrb[0].mxu0
        %v513 = vadd.f32 %v257, %v512
        %v514 = vpop.f32.mrb[0].mxu0
        %515 = vmatprep.mubr.f32.mxu0 0.0
        %516 = vmatmul.mubr.f32.gmra.mrb[0].mxu0 %v318
        %v517 = vpop.f32.mrb[0].mxu0
        %v518 = vadd.f32 %v257, %v517
        %v519 = vpop.f32.mrb[0].mxu0
        %520 = vmatprep.mubr.f32.mxu0 0.0
        %521 = vmatmul.mubr.f32.gmra.mrb[0].mxu0 %v321
        %v522 = vpop.f32.mrb[0].mxu0
        %v523 = vadd.f32 %v257, %v522
        %v524 = vpop.f32.mrb[0].mxu0
        %525 = vmatprep.mubr.f32.mxu0 0.0
        %526 = vmatmul.mubr.f32.gmra.mrb[0].mxu0 %v324
        %v527 = vpop.f32.mrb[0].mxu0
        %v528 = vadd.f32 %v257, %v527
        %v529 = vpop.f32.mrb[0].mxu0
        %530 = vmatprep.mubr.f32.mxu0 0.0
        %531 = vmatmul.mubr.f32.gmra.mrb[0].mxu0 %v327
        %v532 = vpop.f32.mrb[0].mxu0
        %v533 = vadd.f32 %v257, %v532
        %v534 = vpop.f32.mrb[0].mxu0
        %535 = vmatprep.mubr.f32.mxu0 0.0
        %536 = vmatmul.mubr.f32.gmra.mrb[0].mxu0 %v330
        %v537 = vpop.f32.mrb[0].mxu0
        %v538 = vadd.f32 %v257, %v537
        %v539 = vpop.f32.mrb[0].mxu0
        %540 = vmatprep.mubr.f32.mxu0 0.0
        %541 = vmatmul.mubr.f32.gmra.mrb[0].mxu0 %v333
        %v542 = vpop.f32.mrb[0].mxu0
        %v543 = vadd.f32 %v257, %v542
        %v544 = vpop.f32.mrb[0].mxu0
        %545 = vmatprep.mubr.f32.mxu0 0.0
        %546 = vmatmul.mubr.f32.gmra.mrb[0].mxu0 %v336
        %v547 = vpop.f32.mrb[0].mxu0
        %v548 = vadd.f32 %v257, %v547
        %v549 = vpop.f32.mrb[0].mxu0
        %550 = vmatprep.mubr.f32.mxu0 0.0
        %551 = vmatmul.mubr.f32.gmra.mrb[0].mxu0 %v339
        %v552 = vpop.f32.mrb[0].mxu0
        %v553 = vadd.f32 %v257, %v552
        %v554 = vpop.f32.mrb[0].mxu0
        %555 = vmatprep.mubr.f32.mxu0 0.0
        %556 = vmatmul.mubr.f32.gmra.mrb[0].mxu0 %v342
        %v557 = vpop.f32.mrb[0].mxu0
        %v558 = vadd.f32 %v257, %v557
        %v559 = vpop.f32.mrb[0].mxu0
        %560 = vmatprep.mubr.f32.mxu0 0.0
        %561 = vmatmul.mubr.f32.gmra.mrb[0].mxu0 %v345
        %v562 = vpop.f32.mrb[0].mxu0
        %v563 = vadd.f32 %v257, %v562
        %v564 = vpop.f32.mrb[0].mxu0
        %565 = vmatprep.mubr.f32.mxu0 0.0
        %566 = vmatmul.mubr.f32.gmra.mrb[0].mxu0 %v348
        %v567 = vpop.f32.mrb[0].mxu0
        %v568 = vadd.f32 %v257, %v567
        %v569 = vpop.f32.mrb[0].mxu0
        %570 = vmatprep.mubr.f32.mxu0 0.0
        %571 = vmatmul.mubr.f32.gmra.mrb[0].mxu0 %v351
        %v572 = vpop.f32.mrb[0].mxu0
        %v573 = vadd.f32 %v257, %v572
        %v574 = vpop.f32.mrb[0].mxu0
        %575 = vmatprep.mubr.f32.mxu0 0.0
        %576 = vmatmul.mubr.f32.gmra.mrb[0].mxu0 %v354
        %v577 = vpop.f32.mrb[0].mxu0
        %v578 = vadd.f32 %v257, %v577
        %v579 = vpop.f32.mrb[0].mxu0
        %580 = vdwg.mxu0
        %v581 = vmax.f32 %v423, 0.0
        %v582 = vmax.f32 %v428, 0.0
        %v583 = vmax.f32 %v433, 0.0
        %v584 = vmax.f32 %v438, 0.0
        %v585 = vmax.f32 %v443, 0.0
        %v586 = vmax.f32 %v448, 0.0
        %v587 = vmax.f32 %v453, 0.0
        %v588 = vmax.f32 %v458, 0.0
        %v589 = vmax.f32 %v463, 0.0
        %v590 = vmax.f32 %v468, 0.0
        %v591 = vmax.f32 %v473, 0.0
        %v592 = vmax.f32 %v478, 0.0
        %v593 = vmax.f32 %v483, 0.0
        %v594 = vmax.f32 %v488, 0.0
        %v595 = vmax.f32 %v493, 0.0
        %v596 = vmax.f32 %v498, 0.0
        %v597 = vmax.f32 %v503, 0.0
        %v598 = vmax.f32 %v508, 0.0
        %v599 = vmax.f32 %v513, 0.0
        %v600 = vmax.f32 %v518, 0.0
        %v601 = vmax.f32 %v523, 0.0
        %v602 = vmax.f32 %v528, 0.0
        %v603 = vmax.f32 %v533, 0.0
        %v604 = vmax.f32 %v538, 0.0
        %v605 = vmax.f32 %v543, 0.0
        %v606 = vmax.f32 %v548, 0.0
        %v607 = vmax.f32 %v553, 0.0
        %v608 = vmax.f32 %v558, 0.0
        %v609 = vmax.f32 %v563, 0.0
        %v610 = vmax.f32 %v568, 0.0
        %v611 = vmax.f32 %v573, 0.0
        %v612 = vmax.f32 %v578, 0.0
        %vm613 = vcmask 31744
        %614 = vst.msk [vmem:[%s215] sm:$0xff] %vm613, %v581
        %615 = vst.msk [vmem:[%s215 + $0x8] sm:$0xff] %vm613, %v582
        %616 = vst.msk [vmem:[%s215 + $0x10] sm:$0xff] %vm613, %v583
        %617 = vst.msk [vmem:[%s215 + $0x18] sm:$0xff] %vm613, %v584
        %618 = vst.msk [vmem:[%s215 + $0x20] sm:$0xff] %vm613, %v585
        %619 = vst.msk [vmem:[%s215 + $0x28] sm:$0xff] %vm613, %v586
        %620 = vst.msk [vmem:[%s215 + $0x30] sm:$0xff] %vm613, %v587
        %621 = vst.msk [vmem:[%s215 + $0x38] sm:$0xff] %vm613, %v588
        %622 = vst.msk [vmem:[%s215 + $0x40] sm:$0xff] %vm613, %v589
        %623 = vst.msk [vmem:[%s215 + $0x48] sm:$0xff] %vm613, %v590
        %624 = vst.msk [vmem:[%s215 + $0x50] sm:$0xff] %vm613, %v591
        %625 = vst.msk [vmem:[%s215 + $0x58] sm:$0xff] %vm613, %v592
        %626 = vst.msk [vmem:[%s215 + $0x60] sm:$0xff] %vm613, %v593
        %627 = vst.msk [vmem:[%s215 + $0x68] sm:$0xff] %vm613, %v594
        %628 = vst.msk [vmem:[%s215 + $0x70] sm:$0xff] %vm613, %v595
        %629 = vst.msk [vmem:[%s215 + $0x78] sm:$0xff] %vm613, %v596
        %630 = vst.msk [vmem:[%s215 + $0x80] sm:$0xff] %vm613, %v597
        %631 = vst.msk [vmem:[%s215 + $0x88] sm:$0xff] %vm613, %v598
        %632 = vst.msk [vmem:[%s215 + $0x90] sm:$0xff] %vm613, %v599
        %633 = vst.msk [vmem:[%s215 + $0x98] sm:$0xff] %vm613, %v600
        %634 = vst.msk [vmem:[%s215 + $0xa0] sm:$0xff] %vm613, %v601
        %635 = vst.msk [vmem:[%s215 + $0xa8] sm:$0xff] %vm613, %v602
        %636 = vst.msk [vmem:[%s215 + $0xb0] sm:$0xff] %vm613, %v603
        %637 = vst.msk [vmem:[%s215 + $0xb8] sm:$0xff] %vm613, %v604
        %638 = vst.msk [vmem:[%s215 + $0xc0] sm:$0xff] %vm613, %v605
        %639 = vst.msk [vmem:[%s215 + $0xc8] sm:$0xff] %vm613, %v606
        %640 = vst.msk [vmem:[%s215 + $0xd0] sm:$0xff] %vm613, %v607
        %641 = vst.msk [vmem:[%s215 + $0xd8] sm:$0xff] %vm613, %v608
        %642 = vst.msk [vmem:[%s215 + $0xe0] sm:$0xff] %vm613, %v609
        %643 = vst.msk [vmem:[%s215 + $0xe8] sm:$0xff] %vm613, %v610
        %644 = vst.msk [vmem:[%s215 + $0xf0] sm:$0xff] %vm613, %v611
        %645 = vst.msk [vmem:[%s215 + $0xf8] sm:$0xff] %vm613, %v612
        %s646 = sand.u32 %s97, 1
        %s647 = scalar_lea.sflag [#allocation4], %s646
        %s648 = sand.u32 %s97, 1
        %s649 = smul.addr %s648, 256
        %s650 = scalar_lea.vmem [#allocation8], %s649
        // Predicated region
        $region45: #{tpu_custom_call.1} parent=31 // pred_check
          %p651 = pneg %p107
        $region46: #{tpu_custom_call.1} parent=31 // pred_check_branch
          %653 = sbr.rel (%p651) target = $region48
        $region47: #{tpu_custom_call.1} parent=31 // pred_region
          %s654 = smul.u32 32, %s21
          %s656 = ssub.s32 4096, 4096
          %657 = vsyncadd %s647, %s656
          %s658 = smul.addr %s654, 128
          %s659 = scalar_lea.hbm %s3, %s658
          %s660 = sshll.u32 %s650, 4
          %s661 = int_to_ptr.vmem [resolvable:$true] %s660
          %666 = dma.vmem_to_hbm [thread:$0]  %s661, 4096, %s659, %s647, 128, 128, 8
        $region48: #{tpu_custom_call.1} parent=31 // pred_fallthru
          _
      $region32: #{tpu_custom_call.1} parent=5 // pred_fallthru
        _
      %p667 = scmp.le.s32.totalorder 2, %s16
      // Predicated region
      $region49: #{tpu_custom_call.1} parent=5 // pred_check
        %p668 = pneg %p667
      $region50: #{tpu_custom_call.1} parent=5 // pred_check_branch
        %670 = sbr.rel (%p668) target = $region52
      $region51: #{tpu_custom_call.1} parent=5 // pred_region
        %s671 = ssub.s32 %s16, 2
        // Predicated region
        $region53: #{tpu_custom_call.1} parent=51 // pred_check
          %p672 = pneg %p113
        $region54: #{tpu_custom_call.1} parent=51 // pred_check_branch
          %674 = sbr.rel (%p672) target = $region56
        $region55: #{tpu_custom_call.1} parent=51 // pred_region
          %s675 = sand.u32 %s98, 1
          %s676 = scalar_lea.sflag [#allocation4], %s675
          %s677 = sand.u32 %s98, 1
          %s678 = smul.addr %s677, 256
          %s679 = scalar_lea.vmem [#allocation8], %s678
          %680 = dma.done %s676, 4096
        $region56: #{tpu_custom_call.1} parent=51 // pred_fallthru
          _
      $region52: #{tpu_custom_call.1} parent=5 // pred_fallthru
        _
    $region6: #{tpu_custom_call.1} parent=1 // loop_footer
      %s20 = sadd.s32 1, %s16
    $region7: #{tpu_custom_call.1} parent=1 // loop_footer_branch
      %15 = sbr.rel target = $region3
    $region8: #{tpu_custom_call.1} parent=1 // loop_exit
      _
    %681 = vsyncpa [#allocation3], 1
    %s682 = scalar_lea.sflag [#allocation3], 1
    %683 = vsyncpa %s682, 1
    %684 = vsyncpa [#allocation6], 1
    %685 = vsyncpa [#allocation4], 1
    %s686 = scalar_lea.sflag [#allocation4], 1
    %687 = vsyncpa %s686, 1

</llo_original>
